<compile_context>
chip_gen: v5e
topology: v5e:2x2
jax: 0.10.0
libtpu: 0.0.40
codegen_flags: <defaults>
</compile_context>

<pallas_src>
import jax
import jax.numpy as jnp
from jax.experimental import pallas as pl
from jax.experimental.pallas import tpu as pltpu


def mlp_kernel(x_ref, w1_ref, b1_ref, w2_ref, b2_ref, w3_ref, b3_ref, out_ref):
    x = x_ref[...]                                                   # (TB, 13) bf16

    # Linear1 + ReLU  (f32 accumulate on the MXU, elementwise in f32)
    h1 = jnp.dot(x, w1_ref[...], preferred_element_type=jnp.float32)
    h1 = jnp.maximum(h1 + b1_ref[...], 0.0)                          # (TB, 50) f32

    # Linear2 + folded sigmoid: t = tanh(h1 @ (0.5*W2) + 0.5*b2).
    # Single bf16 epilogue pass (cast, bias-add, tanh) feeding matmul3 directly.
    z = jnp.dot(h1.astype(w2_ref.dtype), w2_ref[...],
                preferred_element_type=jnp.float32)                  # (TB, 256) f32
    t = jnp.tanh(z.astype(b2_ref.dtype) + b2_ref[...])               # (TB, 256) bf16

    # Output linear with folded constants: y = t @ (0.5*W3) + (b3 + 0.5*sum(W3))
    y = jnp.dot(t, w3_ref[...], preferred_element_type=jnp.float32)
    out_ref[...] = (y + b3_ref[...]).astype(out_ref.dtype)           # (TB, 4)


def _round_up(n, m):
    return ((n + m - 1) // m) * m


def network_1_forward(x, params, *, tile_b=4096, use_bf16=True):
    """x: (B, 13) float32. params: dict of f32 weights/biases in (in, out) layout."""
    compute_dtype = jnp.bfloat16 if use_bf16 else jnp.float32

    # --- Fold sigmoid affine constants into layer-2 / layer-3 params (f32). ---
    w2f = 0.5 * params["w2"]                                          # (50, 250)
    b2f = 0.5 * params["b2"]                                          # (1, 250)
    w3f = 0.5 * params["w3"]                                          # (250, 4)
    b3f = params["b3"] + 0.5 * jnp.sum(params["w3"], axis=0, keepdims=True)

    # --- Zero-pad hidden dim 250 -> 256 (lane-dense (TB,256) intermediate). ---
    H2P = 256
    pad = H2P - w2f.shape[1]
    w2p = jnp.pad(w2f, ((0, 0), (0, pad)))                            # (50, 256)
    b2p = jnp.pad(b2f, ((0, 0), (0, pad)))                            # (1, 256), pads = 0
    w3p = jnp.pad(w3f, ((0, pad), (0, 0)))                            # (256, 4), pad rows = 0

    w1 = params["w1"].astype(compute_dtype)
    b1 = params["b1"].astype(jnp.float32)
    w2 = w2p.astype(compute_dtype)
    b2 = b2p.astype(compute_dtype)        # bf16 bias for the bf16 epilogue
    w3 = w3p.astype(compute_dtype)
    b3 = b3f.astype(jnp.float32)

    B, F_in = x.shape
    assert F_in == 13

    # Batch tile: multiple of 8 (sublane rule), capped by tile_b, and capped at
    # ~B/2 so there are >= 2 grid steps for megacore sharding on v7x.  Pad B up
    # to a multiple of TB so every grid step sees a full tile (pad rows sliced
    # off at the end; rows are independent so padding is harmless).
    TB = min(_round_up(tile_b, 8), max(8, _round_up((B + 1) // 2, 8)))
    Bp = _round_up(B, TB)
    x_c = x.astype(compute_dtype)
    if Bp != B:
        x_c = jnp.pad(x_c, ((0, Bp - B), (0, 0)))

    grid = (Bp // TB,)

    def resident(arr):
        nd = arr.ndim
        return pl.BlockSpec(arr.shape, lambda i, _nd=nd: (0,) * _nd)

    out = pl.pallas_call(
        mlp_kernel,
        out_shape=jax.ShapeDtypeStruct((Bp, 4), jnp.float32),
        grid=grid,
        in_specs=[
            pl.BlockSpec((TB, 13), lambda i: (i, 0)),   # x: streamed per tile
            resident(w1), resident(b1),                 # weights/biases: VMEM-resident
            resident(w2), resident(b2),
            resident(w3), resident(b3),
        ],
        out_specs=pl.BlockSpec((TB, 4), lambda i: (i, 0)),
        compiler_params=pltpu.CompilerParams(
            dimension_semantics=("parallel",),          # megacore sharding on v7x
        ),
    )(x_c, w1, b1, w2, b2, w3, b3)

    return out[:B]


def init_params(key):
    """Deterministic init mimicking torch.nn.Linear default (U[-1/sqrt(fan_in), ...])."""
    def linear_init(k, fan_in, fan_out):
        kw, kb = jax.random.split(k)
        bound = 1.0 / jnp.sqrt(fan_in)
        w = jax.random.uniform(kw, (fan_in, fan_out), jnp.float32, -bound, bound)
        b = jax.random.uniform(kb, (1, fan_out), jnp.float32, -bound, bound)
        return w, b

    k1, k2, k3 = jax.random.split(key, 3)
    w1, b1 = linear_init(k1, 13, 50)
    w2, b2 = linear_init(k2, 50, 250)
    w3, b3 = linear_init(k3, 250, 4)
    return {"w1": w1, "b1": b1, "w2": w2, "b2": b2, "w3": w3, "b3": b3}


def reference_forward(x, params):
    h1 = jnp.maximum(x @ params["w1"] + params["b1"], 0.0)
    h2 = jax.nn.sigmoid(h1 @ params["w2"] + params["b2"])
    return h2 @ params["w3"] + params["b3"]


if __name__ == "__main__":
    key = jax.random.PRNGKey(0)
    kx, kp, kx2 = jax.random.split(key, 3)
    params = init_params(kp)

    # Case 1: small batch, single grid step.
    B = 8
    x = jax.random.normal(kx, (B, 13), jnp.float32)
    out = jax.block_until_ready(network_1_forward(x, params, tile_b=8))
    ref = reference_forward(x, params)
    assert out.shape == (B, 4), out.shape
    # bf16 matmul operands + bf16 layer-2 epilogue (f32 MXU accumulation) ->
    # loosened tolerance vs the f32 reference.
    assert jnp.allclose(out, ref, atol=2e-2, rtol=2e-2), "mismatch vs JAX reference (case 1)"

    # Case 2: batch not a multiple of the tile -> exercises padding + multi-step grid.
    B2 = 13
    x2 = jax.random.normal(kx2, (B2, 13), jnp.float32)
    out2 = jax.block_until_ready(network_1_forward(x2, params, tile_b=8))
    ref2 = reference_forward(x2, params)
    assert out2.shape == (B2, 4), out2.shape
    assert jnp.allclose(out2, ref2, atol=2e-2, rtol=2e-2), "mismatch vs JAX reference (case 2)"

    # Case 3: larger batch with the default (large) tile, multi-step grid.
    B3 = 1000
    x3 = jax.random.normal(kx, (B3, 13), jnp.float32)
    out3 = jax.block_until_ready(network_1_forward(x3, params))
    ref3 = reference_forward(x3, params)
    assert out3.shape == (B3, 4), out3.shape
    assert jnp.allclose(out3, ref3, atol=2e-2, rtol=2e-2), "mismatch vs JAX reference (case 3)"

    print("KERNEL_OK")
</pallas_src>

<mosaic_0001>
module attributes {stable_mosaic.version = 11 : i64} {
  func.func @mlp_kernel(%arg0: i32, %arg1: memref<8x13xbf16, #tpu.memory_space<vmem>>, %arg2: memref<13x50xbf16, #tpu.memory_space<vmem>>, %arg3: memref<1x50xf32, #tpu.memory_space<vmem>>, %arg4: memref<50x256xbf16, #tpu.memory_space<vmem>>, %arg5: memref<1x256xbf16, #tpu.memory_space<vmem>>, %arg6: memref<256x4xbf16, #tpu.memory_space<vmem>>, %arg7: memref<1x4xf32, #tpu.memory_space<vmem>>, %arg8: memref<8x4xf32, #tpu.memory_space<vmem>>) attributes {dimension_semantics = [#tpu.dimension_semantics<parallel>], iteration_bounds = array<i64: 1>, scalar_prefetch = 0 : i64, scratch_operands = 0 : i64, tpu.core_type = #tpu.core_type<tc>, window_params = [{transform_indices = @transform_0, window_bounds = array<i64: 8, 13>}, {pipeline_mode = #tpu.pipeline_mode<synchronous>, transform_indices = @transform_1, window_bounds = array<i64: 13, 50>}, {pipeline_mode = #tpu.pipeline_mode<synchronous>, transform_indices = @transform_2, window_bounds = array<i64: 1, 50>}, {pipeline_mode = #tpu.pipeline_mode<synchronous>, transform_indices = @transform_3, window_bounds = array<i64: 50, 256>}, {pipeline_mode = #tpu.pipeline_mode<synchronous>, transform_indices = @transform_4, window_bounds = array<i64: 1, 256>}, {pipeline_mode = #tpu.pipeline_mode<synchronous>, transform_indices = @transform_5, window_bounds = array<i64: 256, 4>}, {pipeline_mode = #tpu.pipeline_mode<synchronous>, transform_indices = @transform_6, window_bounds = array<i64: 1, 4>}, {transform_indices = @transform_7, window_bounds = array<i64: 8, 4>}]} {
    %c0 = arith.constant 0 : index
    %c0_0 = arith.constant 0 : index
    %0 = vector.load %arg1[%c0, %c0_0] : memref<8x13xbf16, #tpu.memory_space<vmem>>, vector<8x13xbf16>
    %c0_1 = arith.constant 0 : index
    %c0_2 = arith.constant 0 : index
    %1 = vector.load %arg2[%c0_1, %c0_2] : memref<13x50xbf16, #tpu.memory_space<vmem>>, vector<13x50xbf16>
    %cst = arith.constant dense<0.000000e+00> : vector<8x50xf32>
    %2 = tpu.matmul %0, %1, %cst {dimension_numbers = #tpu.dot_dimension_numbers<[1], [0], [0], [1], [0, 0, 1, 1], [], []>} : vector<8x13xbf16>, vector<13x50xbf16>, vector<8x50xf32> -> vector<8x50xf32>
    %c0_3 = arith.constant 0 : index
    %c0_4 = arith.constant 0 : index
    %3 = vector.load %arg3[%c0_3, %c0_4] : memref<1x50xf32, #tpu.memory_space<vmem>>, vector<1x50xf32>
    %4 = vector.broadcast %3 : vector<1x50xf32> to vector<8x50xf32>
    %5 = arith.addf %2, %4 : vector<8x50xf32>
    %cst_5 = arith.constant 0.000000e+00 : f32
    %6 = vector.broadcast %cst_5 : f32 to vector<8x50xf32>
    %7 = arith.maximumf %5, %6 : vector<8x50xf32>
    %8 = arith.truncf %7 : vector<8x50xf32> to vector<8x50xbf16>
    %c0_6 = arith.constant 0 : index
    %c0_7 = arith.constant 0 : index
    %9 = vector.load %arg4[%c0_6, %c0_7] : memref<50x256xbf16, #tpu.memory_space<vmem>>, vector<50x256xbf16>
    %cst_8 = arith.constant dense<0.000000e+00> : vector<8x256xf32>
    %10 = tpu.matmul %8, %9, %cst_8 {dimension_numbers = #tpu.dot_dimension_numbers<[1], [0], [0], [1], [0, 0, 1, 1], [], []>} : vector<8x50xbf16>, vector<50x256xbf16>, vector<8x256xf32> -> vector<8x256xf32>
    %11 = arith.truncf %10 : vector<8x256xf32> to vector<8x256xbf16>
    %c0_9 = arith.constant 0 : index
    %c0_10 = arith.constant 0 : index
    %12 = vector.load %arg5[%c0_9, %c0_10] : memref<1x256xbf16, #tpu.memory_space<vmem>>, vector<1x256xbf16>
    %13 = vector.broadcast %12 : vector<1x256xbf16> to vector<8x256xbf16>
    %14 = arith.addf %11, %13 : vector<8x256xbf16>
    %15 = math.tanh %14 : vector<8x256xbf16>
    %c0_11 = arith.constant 0 : index
    %c0_12 = arith.constant 0 : index
    %16 = vector.load %arg6[%c0_11, %c0_12] : memref<256x4xbf16, #tpu.memory_space<vmem>>, vector<256x4xbf16>
    %cst_13 = arith.constant dense<0.000000e+00> : vector<8x4xf32>
    %17 = tpu.matmul %15, %16, %cst_13 {dimension_numbers = #tpu.dot_dimension_numbers<[1], [0], [0], [1], [0, 0, 1, 1], [], []>} : vector<8x256xbf16>, vector<256x4xbf16>, vector<8x4xf32> -> vector<8x4xf32>
    %c0_14 = arith.constant 0 : index
    %c0_15 = arith.constant 0 : index
    %18 = vector.load %arg7[%c0_14, %c0_15] : memref<1x4xf32, #tpu.memory_space<vmem>>, vector<1x4xf32>
    %19 = vector.broadcast %18 : vector<1x4xf32> to vector<8x4xf32>
    %20 = arith.addf %17, %19 : vector<8x4xf32>
    %c0_16 = arith.constant 0 : index
    %c0_17 = arith.constant 0 : index
    %21 = vector.load %arg8[%c0_16, %c0_17] : memref<8x4xf32, #tpu.memory_space<vmem>>, vector<8x4xf32>
    tpu.vector_store %arg8[%c0_16, %c0_17], %20 {strides = array<i32>} : memref<8x4xf32, #tpu.memory_space<vmem>>, vector<8x4xf32>,
    return
  }
  func.func @transform_0(%arg0: i32) -> (i32, i32) {
    %c0_i32 = arith.constant 0 : i32
    %c0_i32_0 = arith.constant 0 : i32
    return %arg0, %c0_i32 : i32, i32
  }
  func.func @transform_1(%arg0: i32) -> (i32, i32) {
    %c0_i32 = arith.constant 0 : i32
    %c0_i32_0 = arith.constant 0 : i32
    %c0_i32_1 = arith.constant 0 : i32
    return %c0_i32, %c0_i32_0 : i32, i32
  }
  func.func @transform_2(%arg0: i32) -> (i32, i32) {
    %c0_i32 = arith.constant 0 : i32
    %c0_i32_0 = arith.constant 0 : i32
    %c0_i32_1 = arith.constant 0 : i32
    return %c0_i32, %c0_i32_0 : i32, i32
  }
  func.func @transform_3(%arg0: i32) -> (i32, i32) {
    %c0_i32 = arith.constant 0 : i32
    %c0_i32_0 = arith.constant 0 : i32
    %c0_i32_1 = arith.constant 0 : i32
    return %c0_i32, %c0_i32_0 : i32, i32
  }
  func.func @transform_4(%arg0: i32) -> (i32, i32) {
    %c0_i32 = arith.constant 0 : i32
    %c0_i32_0 = arith.constant 0 : i32
    %c0_i32_1 = arith.constant 0 : i32
    return %c0_i32, %c0_i32_0 : i32, i32
  }
  func.func @transform_5(%arg0: i32) -> (i32, i32) {
    %c0_i32 = arith.constant 0 : i32
    %c0_i32_0 = arith.constant 0 : i32
    %c0_i32_1 = arith.constant 0 : i32
    return %c0_i32, %c0_i32_0 : i32, i32
  }
  func.func @transform_6(%arg0: i32) -> (i32, i32) {
    %c0_i32 = arith.constant 0 : i32
    %c0_i32_0 = arith.constant 0 : i32
    %c0_i32_1 = arith.constant 0 : i32
    return %c0_i32, %c0_i32_0 : i32, i32
  }
  func.func @transform_7(%arg0: i32) -> (i32, i32) {
    %c0_i32 = arith.constant 0 : i32
    %c0_i32_0 = arith.constant 0 : i32
    return %arg0, %c0_i32 : i32, i32
  }
}

</mosaic_0001>

<llo_original>
// kernel: tpu_custom_call.1
$region0: #{tpu_custom_call.1}
  #allocation0 [shape = 'u32[]', space=smem, size = 0x4, offset = 0x4, fixed_abs, tag = 'smem constant byte address 0x4 - core index']
  #allocation1 [shape = 'u32[72,128]{1,0:T(1,128)}', space=vmem, size = 0x9000, scoped, tag = 'internal scratch']
  %s0 = inlined_call_operand.vmem [shape: bf16[8,13], index: 0, kind: input, shape index: {}]
  %s1 = inlined_call_operand.vmem [shape: bf16[13,50], index: 1, kind: input, shape index: {}]
  %s2 = inlined_call_operand.vmem [shape: f32[1,50], index: 2, kind: input, shape index: {}]
  %s3 = inlined_call_operand.vmem [shape: bf16[50,256], index: 3, kind: input, shape index: {}]
  %s4 = inlined_call_operand.vmem [shape: bf16[1,256], index: 4, kind: input, shape index: {}]
  %s5 = inlined_call_operand.vmem [shape: bf16[256,4], index: 5, kind: input, shape index: {}]
  %s6 = inlined_call_operand.vmem [shape: f32[1,4], index: 6, kind: input, shape index: {}]
  %s7 = inlined_call_operand.vmem [shape: f32[8,4], index: 7, kind: output, shape index: {}]
  %s8 = sld [smem:[#allocation0]]
  $region38: #{tpu_custom_call.1} parent=0
    _
  %s10 = ssub.s32 1, %s8
  %s11 = scalar_select 0, %s10, %s8
  // Predicated region
  $region2: #{tpu_custom_call.1} parent=0 // pred_check
    _
  $region3: #{tpu_custom_call.1} parent=0 // pred_check_branch
    %13 = sbr.rel (0) target = $region5
  $region4: #{tpu_custom_call.1} parent=0 // pred_region
    _
  $region5: #{tpu_custom_call.1} parent=0 // pred_fallthru
    _
  // Predicated region
  $region6: #{tpu_custom_call.1} parent=0 // pred_check
    _
  $region7: #{tpu_custom_call.1} parent=0 // pred_check_branch
    %15 = sbr.rel (0) target = $region9
  $region8: #{tpu_custom_call.1} parent=0 // pred_region
    _
  $region9: #{tpu_custom_call.1} parent=0 // pred_fallthru
    _
  // Predicated region
  $region10: #{tpu_custom_call.1} parent=0 // pred_check
    _
  $region11: #{tpu_custom_call.1} parent=0 // pred_check_branch
    %17 = sbr.rel (0) target = $region13
  $region12: #{tpu_custom_call.1} parent=0 // pred_region
    _
  $region13: #{tpu_custom_call.1} parent=0 // pred_fallthru
    _
  // Predicated region
  $region14: #{tpu_custom_call.1} parent=0 // pred_check
    _
  $region15: #{tpu_custom_call.1} parent=0 // pred_check_branch
    %19 = sbr.rel (0) target = $region17
  $region16: #{tpu_custom_call.1} parent=0 // pred_region
    _
  $region17: #{tpu_custom_call.1} parent=0 // pred_fallthru
    _
  // Predicated region
  $region18: #{tpu_custom_call.1} parent=0 // pred_check
    _
  $region19: #{tpu_custom_call.1} parent=0 // pred_check_branch
    %21 = sbr.rel (0) target = $region21
  $region20: #{tpu_custom_call.1} parent=0 // pred_region
    _
  $region21: #{tpu_custom_call.1} parent=0 // pred_fallthru
    _
  // Predicated region
  $region22: #{tpu_custom_call.1} parent=0 // pred_check
    _
  $region23: #{tpu_custom_call.1} parent=0 // pred_check_branch
    %23 = sbr.rel (0) target = $region25
  $region24: #{tpu_custom_call.1} parent=0 // pred_region
    _
  $region25: #{tpu_custom_call.1} parent=0 // pred_fallthru
    _
  // Predicated region
  $region26: #{tpu_custom_call.1} parent=0 // pred_check
    _
  $region27: #{tpu_custom_call.1} parent=0 // pred_check_branch
    %25 = sbr.rel (0) target = $region29
  $region28: #{tpu_custom_call.1} parent=0 // pred_region
    _
  $region29: #{tpu_custom_call.1} parent=0 // pred_fallthru
    _
  %v27 = vld [vmem:[%s0] sm:$0xf]
  %v28 = vld [vmem:[%s1] sm:$0xf]
  %v29 = vld [vmem:[%s1 + $0x4] sm:$0x7]
  %v30 = vld [vmem:[%s2] sm:$0x1]
  %v32 = vperm.slane %v30, 0
  %v36 = vunpack.c.l.b16 %v28
  %v37 = vunpack.c.l.b16 %v29
  %v38 = vpack.c.b16 %v37, %v36
  %vm39 = vcmask 105472
  %v41 = vsel %vm39, %v27, 0
  %vm43 = vcmask 1045504
  %vm44 = vcmask 1046528
  %v45 = vsel %vm43, 4294967295, 65535
  %v46 = vsel %vm44, %v45, 0
  %v48 = vand.u32 %v38, %v46
  %50 = vmatpush.bf16.msra.mxu0 0
  %51 = vmatpush.bf16.msra.mxu0 0
  %52 = vmatpush.bf16.msra.mxu0 0
  %53 = vmatpush.bf16.msra.mxu0 0
  %54 = vmatpush.bf16.msra.mxu0 0
  %55 = vmatpush.bf16.msra.mxu0 0
  %56 = vmatpush.bf16.msra.mxu0 0
  %57 = vmatpush.bf16.msra.mxu0 %v48
  %58 = vmatmul.bf16.gmra.mxu0 %v41
  %v59 = vpop.f32.mrf.mxu0
  %v60 = vadd.f32 %v32, %v59
  %v61 = vpop.f32.mrf.mxu0
  %62 = vdwg.mxu0
  %v63 = vmax.f32 %v60, 0.0
  %v64 = vpack.c.bf16 %v63, %v63
  %v65 = vld [vmem:[%s3] sm:$0xff]
  %v66 = vld [vmem:[%s3 + $0x8] sm:$0xff]
  %v67 = vld [vmem:[%s3 + $0x10] sm:$0xff]
  %v68 = vld [vmem:[%s3 + $0x18] sm:$0xff]
  %v69 = vld [vmem:[%s3 + $0x20] sm:$0xff]
  %v70 = vld [vmem:[%s3 + $0x28] sm:$0xff]
  %v71 = vld [vmem:[%s3 + $0x30] sm:$0x11]
  %v79 = vunpack.c.l.b16 %v65
  %v80 = vunpack.c.h.b16 %v65
  %v81 = vunpack.c.l.b16 %v66
  %v82 = vunpack.c.h.b16 %v66
  %v83 = vunpack.c.l.b16 %v67
  %v84 = vunpack.c.h.b16 %v67
  %v85 = vunpack.c.l.b16 %v68
  %v86 = vunpack.c.h.b16 %v68
  %v87 = vunpack.c.l.b16 %v69
  %v88 = vunpack.c.h.b16 %v69
  %v89 = vunpack.c.l.b16 %v70
  %v90 = vunpack.c.h.b16 %v70
  %v91 = vunpack.c.l.b16 %v71
  %v92 = vunpack.c.h.b16 %v71
  %v93 = vpack.c.b16 %v81, %v79
  %v94 = vpack.c.b16 %v82, %v80
  %v95 = vpack.c.b16 %v85, %v83
  %v96 = vpack.c.b16 %v86, %v84
  %v97 = vpack.c.b16 %v89, %v87
  %v98 = vpack.c.b16 %v90, %v88
  %v99 = vpack.c.b16 %v91, %v91
  %v100 = vpack.c.b16 %v92, %v92
  %vm107 = vcmask 408576
  %v109 = vsel %vm107, %v64, 0
  %vm111 = vcmask 1040384
  %v113 = vsel %vm111, %v99, 0
  %v116 = vsel %vm111, %v100, 0
  %118 = vmatpush.bf16.msra.mxu0 0
  %119 = vmatpush.bf16.msra.mxu0 0
  %120 = vmatpush.bf16.msra.mxu0 0
  %121 = vmatpush.bf16.msra.mxu0 0
  %122 = vmatpush.bf16.msra.mxu0 %v113
  %123 = vmatpush.bf16.msra.mxu0 %v97
  %124 = vmatpush.bf16.msra.mxu0 %v95
  %125 = vmatpush.bf16.msra.mxu0 %v93
  %126 = vmatmul.bf16.gmra.mxu0 %v109
  %v127 = vpop.f32.mrf.mxu0
  %v128 = vadd.f32 0.0, %v127
  %v129 = vpop.f32.mrf.mxu0
  %130 = vdwg.mxu0
  %131 = vmatpush.bf16.msra.mxu0 0
  %132 = vmatpush.bf16.msra.mxu0 0
  %133 = vmatpush.bf16.msra.mxu0 0
  %134 = vmatpush.bf16.msra.mxu0 0
  %135 = vmatpush.bf16.msra.mxu0 %v116
  %136 = vmatpush.bf16.msra.mxu0 %v98
  %137 = vmatpush.bf16.msra.mxu0 %v96
  %138 = vmatpush.bf16.msra.mxu0 %v94
  %139 = vmatmul.bf16.gmra.mxu0 %v109
  %v140 = vpop.f32.mrf.mxu0
  %v141 = vadd.f32 0.0, %v140
  %v142 = vpop.f32.mrf.mxu0
  %143 = vdwg.mxu0
  %v144 = vpack.c.bf16 %v141, %v128
  %v145 = vld [vmem:[%s4] sm:$0x3]
  %147 = vst [vmem:[#allocation1] ss:$9 sm:$0xff] %v145
  %v148 = vld [vmem:[#allocation1] sm:$0xff]
  %v149 = vld [vmem:[#allocation1 + $0x9] sm:$0xff]
  %v150 = vpack.i.b16 %v148, %v148
  %v152 = vperm.slane %v150, 0
  %v153 = vpack.i.b16 %v149, %v149
  %v155 = vperm.slane %v153, 0
  %v156 = vunpack.c.l.bf16 %v144
  %v157 = vunpack.c.h.bf16 %v144
  %v158 = vunpack.c.l.bf16 %v152
  %v159 = vunpack.c.l.bf16 %v155
  %v160 = vadd.f32 %v156, %v158
  %v161 = vadd.f32 %v157, %v159
  %v162 = vpack.c.bf16 %v160, %v160
  %v163 = vpack.c.bf16 %v161, %v161
  %v164 = vunpack.c.l.bf16 %v162
  %v165 = vunpack.c.l.bf16 %v163
  %v166 = vtanh.pop %v164
  %v167 = vtanh.pop %v165
  %v168 = vpack.c.bf16 %v166, %v166
  %v169 = vpack.c.bf16 %v167, %v167
  %v170 = vld [vmem:[%s5] sm:$0xf]
  %v171 = vld [vmem:[%s5 + $0x4] sm:$0xf]
  %v172 = vld [vmem:[%s5 + $0x8] sm:$0xf]
  %v173 = vld [vmem:[%s5 + $0xc] sm:$0xf]
  %v174 = vld [vmem:[%s5 + $0x10] sm:$0xf]
  %v175 = vld [vmem:[%s5 + $0x14] sm:$0xf]
  %v176 = vld [vmem:[%s5 + $0x18] sm:$0xf]
  %v177 = vld [vmem:[%s5 + $0x1c] sm:$0xf]
  %v178 = vld [vmem:[%s5 + $0x20] sm:$0xf]
  %v179 = vld [vmem:[%s5 + $0x24] sm:$0xf]
  %v180 = vld [vmem:[%s5 + $0x28] sm:$0xf]
  %v181 = vld [vmem:[%s5 + $0x2c] sm:$0xf]
  %v182 = vld [vmem:[%s5 + $0x30] sm:$0xf]
  %v183 = vld [vmem:[%s5 + $0x34] sm:$0xf]
  %v184 = vld [vmem:[%s5 + $0x38] sm:$0xf]
  %v185 = vld [vmem:[%s5 + $0x3c] sm:$0xf]
  %v186 = vld [vmem:[%s5 + $0x40] sm:$0xf]
  %v187 = vld [vmem:[%s5 + $0x44] sm:$0xf]
  %v188 = vld [vmem:[%s5 + $0x48] sm:$0xf]
  %v189 = vld [vmem:[%s5 + $0x4c] sm:$0xf]
  %v190 = vld [vmem:[%s5 + $0x50] sm:$0xf]
  %v191 = vld [vmem:[%s5 + $0x54] sm:$0xf]
  %v192 = vld [vmem:[%s5 + $0x58] sm:$0xf]
  %v193 = vld [vmem:[%s5 + $0x5c] sm:$0xf]
  %v194 = vld [vmem:[%s5 + $0x60] sm:$0xf]
  %v195 = vld [vmem:[%s5 + $0x64] sm:$0xf]
  %v196 = vld [vmem:[%s5 + $0x68] sm:$0xf]
  %v197 = vld [vmem:[%s5 + $0x6c] sm:$0xf]
  %v198 = vld [vmem:[%s5 + $0x70] sm:$0xf]
  %v199 = vld [vmem:[%s5 + $0x74] sm:$0xf]
  %v200 = vld [vmem:[%s5 + $0x78] sm:$0xf]
  %v201 = vld [vmem:[%s5 + $0x7c] sm:$0xf]
  %v202 = vld [vmem:[%s6] sm:$0x1]
  %v204 = vperm.slane %v202, 0
  %v238 = vunpack.c.l.b16 %v170
  %v239 = vunpack.c.l.b16 %v171
  %v240 = vunpack.c.l.b16 %v172
  %v241 = vunpack.c.l.b16 %v173
  %v242 = vunpack.c.l.b16 %v174
  %v243 = vunpack.c.l.b16 %v175
  %v244 = vunpack.c.l.b16 %v176
  %v245 = vunpack.c.l.b16 %v177
  %v246 = vunpack.c.l.b16 %v178
  %v247 = vunpack.c.l.b16 %v179
  %v248 = vunpack.c.l.b16 %v180
  %v249 = vunpack.c.l.b16 %v181
  %v250 = vunpack.c.l.b16 %v182
  %v251 = vunpack.c.l.b16 %v183
  %v252 = vunpack.c.l.b16 %v184
  %v253 = vunpack.c.l.b16 %v185
  %v254 = vunpack.c.l.b16 %v186
  %v255 = vunpack.c.l.b16 %v187
  %v256 = vunpack.c.l.b16 %v188
  %v257 = vunpack.c.l.b16 %v189
  %v258 = vunpack.c.l.b16 %v190
  %v259 = vunpack.c.l.b16 %v191
  %v260 = vunpack.c.l.b16 %v192
  %v261 = vunpack.c.l.b16 %v193
  %v262 = vunpack.c.l.b16 %v194
  %v263 = vunpack.c.l.b16 %v195
  %v264 = vunpack.c.l.b16 %v196
  %v265 = vunpack.c.l.b16 %v197
  %v266 = vunpack.c.l.b16 %v198
  %v267 = vunpack.c.l.b16 %v199
  %v268 = vunpack.c.l.b16 %v200
  %v269 = vunpack.c.l.b16 %v201
  %v270 = vpack.c.b16 %v239, %v238
  %v271 = vpack.c.b16 %v241, %v240
  %v272 = vpack.c.b16 %v243, %v242
  %v273 = vpack.c.b16 %v245, %v244
  %v274 = vpack.c.b16 %v247, %v246
  %v275 = vpack.c.b16 %v249, %v248
  %v276 = vpack.c.b16 %v251, %v250
  %v277 = vpack.c.b16 %v253, %v252
  %v278 = vpack.c.b16 %v255, %v254
  %v279 = vpack.c.b16 %v257, %v256
  %v280 = vpack.c.b16 %v259, %v258
  %v281 = vpack.c.b16 %v261, %v260
  %v282 = vpack.c.b16 %v263, %v262
  %v283 = vpack.c.b16 %v265, %v264
  %v284 = vpack.c.b16 %v267, %v266
  %v285 = vpack.c.b16 %v269, %v268
  %302 = vmatpush.bf16.msra.mxu0 %v277
  %303 = vmatpush.bf16.msra.mxu0 %v276
  %304 = vmatpush.bf16.msra.mxu0 %v275
  %305 = vmatpush.bf16.msra.mxu0 %v274
  %306 = vmatpush.bf16.msra.mxu0 %v273
  %307 = vmatpush.bf16.msra.mxu0 %v272
  %308 = vmatpush.bf16.msra.mxu0 %v271
  %309 = vmatpush.bf16.msra.mxu0 %v270
  %310 = vmatmul.bf16.gmra.mxu0 %v168
  %v311 = vpop.f32.mrf.mxu0
  %v312 = vadd.f32 %v204, %v311
  %v313 = vpop.f32.mrf.mxu0
  %314 = vdwg.mxu0
  %315 = vmatpush.bf16.msra.mxu0 %v285
  %316 = vmatpush.bf16.msra.mxu0 %v284
  %317 = vmatpush.bf16.msra.mxu0 %v283
  %318 = vmatpush.bf16.msra.mxu0 %v282
  %319 = vmatpush.bf16.msra.mxu0 %v281
  %320 = vmatpush.bf16.msra.mxu0 %v280
  %321 = vmatpush.bf16.msra.mxu0 %v279
  %322 = vmatpush.bf16.msra.mxu0 %v278
  %323 = vmatmul.bf16.gmra.mxu0 %v169
  %v324 = vpop.f32.mrf.mxu0
  %v325 = vadd.f32 %v312, %v324
  %v326 = vpop.f32.mrf.mxu0
  %327 = vdwg.mxu0
  %vm328 = vcmask 31744
  %329 = vst.msk [vmem:[%s7] sm:$0xff] %vm328, %v325
  // Predicated region
  $region30: #{tpu_custom_call.1} parent=0 // pred_check
    _
  $region31: #{tpu_custom_call.1} parent=0 // pred_check_branch
    %331 = sbr.rel (0) target = $region33
  $region32: #{tpu_custom_call.1} parent=0 // pred_region
    _
  $region33: #{tpu_custom_call.1} parent=0 // pred_fallthru
    _
  // Predicated region
  $region34: #{tpu_custom_call.1} parent=0 // pred_check
    _
  $region35: #{tpu_custom_call.1} parent=0 // pred_check_branch
    %333 = sbr.rel (0) target = $region37
  $region36: #{tpu_custom_call.1} parent=0 // pred_region
    _
  $region37: #{tpu_custom_call.1} parent=0 // pred_fallthru
    _

</llo_original>
